<compile_context>
chip_gen: v5e
topology: v5e:2x2
jax: 0.10.0
libtpu: 0.0.40
codegen_flags: <defaults>
</compile_context>

<pallas_src>
import functools

import jax
import jax.numpy as jnp
from jax import lax
from jax.experimental import pallas as pl
from jax.experimental.pallas import tpu as pltpu

K_IN = 784       # input features (28*28), fed un-padded (full-dim BlockSpec)
H1, H2 = 256, 128
H3P = 128        # hidden_3 width padded 64 -> 128 lanes (zero columns)
N_OUT = 128      # 10 classes padded to 128 lanes
_NEG = -1e30     # padded-class bias: exp(_NEG - m) underflows to exactly 0

_DROP_P = 0.2
_THRESH31 = int(_DROP_P * (1 << 31))   # keep iff 31-bit hash >= threshold


def _round_up(a, m):
    return ((a + m - 1) // m) * m


def _choose_tiling(batch, max_tile_b):
    """Spread the batch over tiles: >=2 tiles once B >= 32 (v7x dual-TC),
    rows a multiple of 16, per-tile padding kept small."""
    num_tiles = max(pl.cdiv(batch, max_tile_b), 2 if batch >= 32 else 1)
    tile_b = _round_up(pl.cdiv(batch, num_tiles), 16)
    return tile_b, num_tiles


def _mlp_kernel(training,
                seed_ref,
                x_ref, w1_ref, b1_ref, w2_ref, b2_ref,
                w3_ref, b3_ref, w4_ref, b4_ref, o_ref):
    """Fused forward pass for one (TILE_B, 784) batch tile."""

    def dropout(h, layer):
        # nn.Dropout(p=0.2): identity in eval; inverted dropout in train.
        if not training:
            return h
        # Portable counter-based hash RNG (no pltpu.prng_*): distinct stream
        # per (seed, tile) via seed * num_programs + program_id, plus a
        # per-layer offset; one lowbias32-style mix per element on the VPU.
        base = seed_ref[0] * pl.num_programs(0) + pl.program_id(0)
        r = lax.broadcasted_iota(jnp.int32, h.shape, 0)
        c = lax.broadcasted_iota(jnp.int32, h.shape, 1)
        v = (base * jnp.int32(1000003)
             + jnp.int32(layer * 19088743)
             + r * jnp.int32(h.shape[1]) + c)
        v = v ^ lax.shift_right_logical(v, 16)
        v = v * jnp.int32(0x7FEB352D)
        v = v ^ lax.shift_right_logical(v, 15)
        v = v * jnp.int32(0x315D27DB)
        v = v ^ lax.shift_right_logical(v, 16)
        bits = v & jnp.int32(0x7FFFFFFF)          # uniform in [0, 2^31)
        keep = bits >= jnp.int32(_THRESH31)       # P(keep) = 1 - p
        return jnp.where(keep, h * (1.0 / (1.0 - _DROP_P)), 0.0)

    # f32 HBM read; bf16 cast lands on otherwise-idle VPU slots.
    x = x_ref[...].astype(jnp.bfloat16)                       # (TILE_B, 784)

    h = jnp.dot(x, w1_ref[...], preferred_element_type=jnp.float32) + b1_ref[...]
    h = dropout(jnp.maximum(h, 0.0), 1).astype(jnp.bfloat16)

    h = jnp.dot(h, w2_ref[...], preferred_element_type=jnp.float32) + b2_ref[...]
    h = dropout(jnp.maximum(h, 0.0), 2).astype(jnp.bfloat16)

    h = jnp.dot(h, w3_ref[...], preferred_element_type=jnp.float32) + b3_ref[...]
    h = dropout(jnp.maximum(h, 0.0), 3).astype(jnp.bfloat16)

    logits = jnp.dot(h, w4_ref[...], preferred_element_type=jnp.float32) + b4_ref[...]

    # log_softmax over classes; padded lanes carry a -1e30 bias so their
    # exp() contribution is exactly zero -> result over the first 10 lanes
    # equals log_softmax over 10 classes.
    m = jnp.max(logits, axis=-1, keepdims=True)
    s = logits - m
    lse = jnp.log(jnp.sum(jnp.exp(s), axis=-1, keepdims=True))
    o_ref[...] = s - lse


def prepare_params(params):
    """One-time conversion: bf16 weights ((in, out) layout, lane-padded where
    needed), f32 biases."""
    (w1, b1), (w2, b2), (w3, b3), (w4, b4) = params
    w3p = jnp.zeros((H2, H3P), jnp.bfloat16).at[:, :64].set(w3.astype(jnp.bfloat16))
    b3p = jnp.zeros((1, H3P), jnp.float32).at[:, :64].set(b3.astype(jnp.float32))
    w4p = jnp.zeros((H3P, N_OUT), jnp.bfloat16).at[:64, :10].set(w4.astype(jnp.bfloat16))
    b4p = jnp.full((1, N_OUT), _NEG, jnp.float32).at[:, :10].set(b4.astype(jnp.float32))
    return (w1.astype(jnp.bfloat16), b1.astype(jnp.float32),
            w2.astype(jnp.bfloat16), b2.astype(jnp.float32),
            w3p, b3p, w4p, b4p)


def classifier_forward(x, prepared, *, training=False, seed=0, max_tile_b=1024):
    """x: (B, 1, 28, 28) or (B, 784). Returns (B, 10) float32 log-probs."""
    B = x.shape[0]
    x2d = x.reshape(B, K_IN).astype(jnp.float32)    # free view for f32 inputs

    tile_b, num_tiles = _choose_tiling(B, max_tile_b)
    Bp = tile_b * num_tiles
    xp = x2d if Bp == B else jnp.pad(x2d, ((0, Bp - B), (0, 0)))

    w1, b1, w2, b2, w3, b3, w4, b4 = prepared
    seed_arr = jnp.array([seed], dtype=jnp.int32)

    def xmap(i, *_):     # batch-tiled arrays
        return (i, 0)

    def cmap(i, *_):     # resident weights/biases: same block every step
        return (0, 0)

    wflops = K_IN * H1 + H1 * H2 + H2 * H3P + H3P * N_OUT
    cost = pl.CostEstimate(
        flops=2 * Bp * wflops,
        transcendentals=Bp * (N_OUT + 1),
        bytes_accessed=Bp * K_IN * 4 + Bp * N_OUT * 4 + 2 * wflops
                       + (H1 + H2 + H3P + N_OUT) * 4,
    )

    out = pl.pallas_call(
        functools.partial(_mlp_kernel, training),
        out_shape=jax.ShapeDtypeStruct((Bp, N_OUT), jnp.float32),
        grid_spec=pltpu.PrefetchScalarGridSpec(
            num_scalar_prefetch=1,                 # seed -> SMEM
            grid=(num_tiles,),
            in_specs=[
                pl.BlockSpec((tile_b, K_IN), xmap),   # f32 input, no pre-pad/cast
                pl.BlockSpec((K_IN, H1), cmap),
                pl.BlockSpec((1, H1), cmap),
                pl.BlockSpec((H1, H2), cmap),
                pl.BlockSpec((1, H2), cmap),
                pl.BlockSpec((H2, H3P), cmap),
                pl.BlockSpec((1, H3P), cmap),
                pl.BlockSpec((H3P, N_OUT), cmap),
                pl.BlockSpec((1, N_OUT), cmap),
            ],
            out_specs=pl.BlockSpec((tile_b, N_OUT), xmap),
        ),
        compiler_params=pltpu.CompilerParams(
            dimension_semantics=("parallel",),     # shard batch tiles on v7x 2xTC
            vmem_limit_bytes=48 << 20,             # headroom on v7x's 64 MiB VMEM
        ),
        cost_estimate=cost,
    )(seed_arr, xp, w1, b1, w2, b2, w3, b3, w4, b4)

    return out[:B, :10]


def init_params(key):
    """Deterministic init matching nn.Linear shapes (weights stored (in, out))."""
    dims = [(784, 256), (256, 128), (128, 64), (64, 10)]
    params = []
    for i, (fan_in, fan_out) in enumerate(dims):
        kw, kb, key = jax.random.split(jax.random.fold_in(key, i), 3)
        bound = 1.0 / jnp.sqrt(fan_in)
        w = jax.random.uniform(kw, (fan_in, fan_out), jnp.float32, -bound, bound)
        b = jax.random.uniform(kb, (1, fan_out), jnp.float32, -bound, bound)
        params.append((w, b))
    return params


def reference_forward(x, params):
    """Pure-JAX reference (eval mode), mirroring bf16-in / f32-accum matmuls."""
    h = x.reshape(x.shape[0], 784).astype(jnp.float32)
    for i, (w, b) in enumerate(params):
        h = jnp.dot(h.astype(jnp.bfloat16), w.astype(jnp.bfloat16),
                    preferred_element_type=jnp.float32) + b
        if i < 3:
            h = jnp.maximum(h, 0.0)
    return jax.nn.log_softmax(h, axis=1)


if __name__ == "__main__":
    key = jax.random.PRNGKey(0)
    kx, kp = jax.random.split(key)

    # Small MNIST-like batch: (B, C, H, W) = (8, 1, 28, 28).
    x = jax.random.normal(kx, (8, 1, 28, 28), dtype=jnp.float32)
    params = init_params(kp)
    prepared = prepare_params(params)

    # Eval-mode forward (dropout is identity, like PyTorch model.eval()).
    out = jax.block_until_ready(classifier_forward(x, prepared, training=False))
    ref = reference_forward(x, params)
    assert out.shape == (8, 10)
    assert jnp.allclose(out, ref, atol=5e-3, rtol=5e-3), "mismatch vs JAX reference"
    # Rows of log-probs must sum to ~1 after exp.
    assert jnp.allclose(jnp.sum(jnp.exp(out), axis=1), 1.0, atol=1e-3)

    # Training-mode smoke test (portable counter-hash dropout path).
    tr = jax.block_until_ready(classifier_forward(x, prepared, training=True, seed=123))
    assert tr.shape == (8, 10)
    assert bool(jnp.all(jnp.isfinite(tr)))

    print("KERNEL_OK")
</pallas_src>

<mosaic_0001>
module attributes {stable_mosaic.version = 11 : i64} {
  func.func @_mlp_kernel(%arg0: i32, %arg1: memref<1xi32, #tpu.memory_space<smem>>, %arg2: memref<16x784xf32, #tpu.memory_space<vmem>>, %arg3: memref<784x256xbf16, #tpu.memory_space<vmem>>, %arg4: memref<1x256xf32, #tpu.memory_space<vmem>>, %arg5: memref<256x128xbf16, #tpu.memory_space<vmem>>, %arg6: memref<1x128xf32, #tpu.memory_space<vmem>>, %arg7: memref<128x128xbf16, #tpu.memory_space<vmem>>, %arg8: memref<1x128xf32, #tpu.memory_space<vmem>>, %arg9: memref<128x128xbf16, #tpu.memory_space<vmem>>, %arg10: memref<1x128xf32, #tpu.memory_space<vmem>>, %arg11: memref<16x128xf32, #tpu.memory_space<vmem>>) attributes {dimension_semantics = [#tpu.dimension_semantics<parallel>], iteration_bounds = array<i64: 1>, scalar_prefetch = 1 : i64, scratch_operands = 0 : i64, tpu.core_type = #tpu.core_type<tc>, window_params = [{transform_indices = @transform_0, window_bounds = array<i64: 16, 784>}, {pipeline_mode = #tpu.pipeline_mode<synchronous>, transform_indices = @transform_1, window_bounds = array<i64: 784, 256>}, {pipeline_mode = #tpu.pipeline_mode<synchronous>, transform_indices = @transform_2, window_bounds = array<i64: 1, 256>}, {pipeline_mode = #tpu.pipeline_mode<synchronous>, transform_indices = @transform_3, window_bounds = array<i64: 256, 128>}, {pipeline_mode = #tpu.pipeline_mode<synchronous>, transform_indices = @transform_4, window_bounds = array<i64: 1, 128>}, {pipeline_mode = #tpu.pipeline_mode<synchronous>, transform_indices = @transform_5, window_bounds = array<i64: 128, 128>}, {pipeline_mode = #tpu.pipeline_mode<synchronous>, transform_indices = @transform_6, window_bounds = array<i64: 1, 128>}, {pipeline_mode = #tpu.pipeline_mode<synchronous>, transform_indices = @transform_7, window_bounds = array<i64: 128, 128>}, {pipeline_mode = #tpu.pipeline_mode<synchronous>, transform_indices = @transform_8, window_bounds = array<i64: 1, 128>}, {transform_indices = @transform_9, window_bounds = array<i64: 16, 128>}]} {
    %c0 = arith.constant 0 : index
    %c0_0 = arith.constant 0 : index
    %0 = vector.load %arg2[%c0, %c0_0] : memref<16x784xf32, #tpu.memory_space<vmem>>, vector<16x784xf32>
    %1 = arith.truncf %0 : vector<16x784xf32> to vector<16x784xbf16>
    %c0_1 = arith.constant 0 : index
    %c0_2 = arith.constant 0 : index
    %2 = vector.load %arg3[%c0_1, %c0_2] : memref<784x256xbf16, #tpu.memory_space<vmem>>, vector<784x256xbf16>
    %cst = arith.constant dense<0.000000e+00> : vector<16x256xf32>
    %3 = tpu.matmul %1, %2, %cst {dimension_numbers = #tpu.dot_dimension_numbers<[1], [0], [0], [1], [0, 0, 1, 1], [], []>} : vector<16x784xbf16>, vector<784x256xbf16>, vector<16x256xf32> -> vector<16x256xf32>
    %c0_3 = arith.constant 0 : index
    %c0_4 = arith.constant 0 : index
    %4 = vector.load %arg4[%c0_3, %c0_4] : memref<1x256xf32, #tpu.memory_space<vmem>>, vector<1x256xf32>
    %5 = vector.broadcast %4 : vector<1x256xf32> to vector<16x256xf32>
    %6 = arith.addf %3, %5 : vector<16x256xf32>
    %cst_5 = arith.constant 0.000000e+00 : f32
    %7 = vector.broadcast %cst_5 : f32 to vector<16x256xf32>
    %8 = arith.maximumf %6, %7 : vector<16x256xf32>
    %9 = arith.truncf %8 : vector<16x256xf32> to vector<16x256xbf16>
    %c0_6 = arith.constant 0 : index
    %c0_7 = arith.constant 0 : index
    %10 = vector.load %arg5[%c0_6, %c0_7] : memref<256x128xbf16, #tpu.memory_space<vmem>>, vector<256x128xbf16>
    %cst_8 = arith.constant dense<0.000000e+00> : vector<16x128xf32>
    %11 = tpu.matmul %9, %10, %cst_8 {dimension_numbers = #tpu.dot_dimension_numbers<[1], [0], [0], [1], [0, 0, 1, 1], [], []>} : vector<16x256xbf16>, vector<256x128xbf16>, vector<16x128xf32> -> vector<16x128xf32>
    %c0_9 = arith.constant 0 : index
    %c0_10 = arith.constant 0 : index
    %12 = vector.load %arg6[%c0_9, %c0_10] : memref<1x128xf32, #tpu.memory_space<vmem>>, vector<1x128xf32>
    %13 = vector.broadcast %12 : vector<1x128xf32> to vector<16x128xf32>
    %14 = arith.addf %11, %13 : vector<16x128xf32>
    %cst_11 = arith.constant 0.000000e+00 : f32
    %15 = vector.broadcast %cst_11 : f32 to vector<16x128xf32>
    %16 = arith.maximumf %14, %15 : vector<16x128xf32>
    %17 = arith.truncf %16 : vector<16x128xf32> to vector<16x128xbf16>
    %c0_12 = arith.constant 0 : index
    %c0_13 = arith.constant 0 : index
    %18 = vector.load %arg7[%c0_12, %c0_13] : memref<128x128xbf16, #tpu.memory_space<vmem>>, vector<128x128xbf16>
    %cst_14 = arith.constant dense<0.000000e+00> : vector<16x128xf32>
    %19 = tpu.matmul %17, %18, %cst_14 {dimension_numbers = #tpu.dot_dimension_numbers<[1], [0], [0], [1], [0, 0, 1, 1], [], []>} : vector<16x128xbf16>, vector<128x128xbf16>, vector<16x128xf32> -> vector<16x128xf32>
    %c0_15 = arith.constant 0 : index
    %c0_16 = arith.constant 0 : index
    %20 = vector.load %arg8[%c0_15, %c0_16] : memref<1x128xf32, #tpu.memory_space<vmem>>, vector<1x128xf32>
    %21 = vector.broadcast %20 : vector<1x128xf32> to vector<16x128xf32>
    %22 = arith.addf %19, %21 : vector<16x128xf32>
    %cst_17 = arith.constant 0.000000e+00 : f32
    %23 = vector.broadcast %cst_17 : f32 to vector<16x128xf32>
    %24 = arith.maximumf %22, %23 : vector<16x128xf32>
    %25 = arith.truncf %24 : vector<16x128xf32> to vector<16x128xbf16>
    %c0_18 = arith.constant 0 : index
    %c0_19 = arith.constant 0 : index
    %26 = vector.load %arg9[%c0_18, %c0_19] : memref<128x128xbf16, #tpu.memory_space<vmem>>, vector<128x128xbf16>
    %cst_20 = arith.constant dense<0.000000e+00> : vector<16x128xf32>
    %27 = tpu.matmul %25, %26, %cst_20 {dimension_numbers = #tpu.dot_dimension_numbers<[1], [0], [0], [1], [0, 0, 1, 1], [], []>} : vector<16x128xbf16>, vector<128x128xbf16>, vector<16x128xf32> -> vector<16x128xf32>
    %c0_21 = arith.constant 0 : index
    %c0_22 = arith.constant 0 : index
    %28 = vector.load %arg10[%c0_21, %c0_22] : memref<1x128xf32, #tpu.memory_space<vmem>>, vector<1x128xf32>
    %29 = vector.broadcast %28 : vector<1x128xf32> to vector<16x128xf32>
    %30 = arith.addf %27, %29 : vector<16x128xf32>
    %cst_23 = arith.constant dense<0xFF800000> : vector<16xf32>
    %31 = vector.multi_reduction <maximumf>, %30, %cst_23 [1] : vector<16x128xf32> to vector<16xf32>
    %32 = vector.shape_cast %31 : vector<16xf32> to vector<16x1xf32>
    %33 = vector.broadcast %32 : vector<16x1xf32> to vector<16x128xf32>
    %34 = arith.subf %30, %33 : vector<16x128xf32>
    %35 = math.exp %34 : vector<16x128xf32>
    %cst_24 = arith.constant dense<0.000000e+00> : vector<16xf32>
    %36 = vector.multi_reduction <add>, %35, %cst_24 [1] : vector<16x128xf32> to vector<16xf32>
    %37 = vector.shape_cast %36 : vector<16xf32> to vector<16x1xf32>
    %38 = math.log %37 : vector<16x1xf32>
    %39 = vector.broadcast %38 : vector<16x1xf32> to vector<16x128xf32>
    %40 = arith.subf %34, %39 : vector<16x128xf32>
    %c0_25 = arith.constant 0 : index
    %c0_26 = arith.constant 0 : index
    %41 = vector.load %arg11[%c0_25, %c0_26] : memref<16x128xf32, #tpu.memory_space<vmem>>, vector<16x128xf32>
    tpu.vector_store %arg11[%c0_25, %c0_26], %40 {strides = array<i32>} : memref<16x128xf32, #tpu.memory_space<vmem>>, vector<16x128xf32>,
    return
  }
  func.func @transform_0(%arg0: i32, %arg1: memref<1xi32, #tpu.memory_space<smem>>) -> (i32, i32) {
    %c0_i32 = arith.constant 0 : i32
    %c0_i32_0 = arith.constant 0 : i32
    return %arg0, %c0_i32 : i32, i32
  }
  func.func @transform_1(%arg0: i32, %arg1: memref<1xi32, #tpu.memory_space<smem>>) -> (i32, i32) {
    %c0_i32 = arith.constant 0 : i32
    %c0_i32_0 = arith.constant 0 : i32
    %c0_i32_1 = arith.constant 0 : i32
    return %c0_i32, %c0_i32_0 : i32, i32
  }
  func.func @transform_2(%arg0: i32, %arg1: memref<1xi32, #tpu.memory_space<smem>>) -> (i32, i32) {
    %c0_i32 = arith.constant 0 : i32
    %c0_i32_0 = arith.constant 0 : i32
    %c0_i32_1 = arith.constant 0 : i32
    return %c0_i32, %c0_i32_0 : i32, i32
  }
  func.func @transform_3(%arg0: i32, %arg1: memref<1xi32, #tpu.memory_space<smem>>) -> (i32, i32) {
    %c0_i32 = arith.constant 0 : i32
    %c0_i32_0 = arith.constant 0 : i32
    %c0_i32_1 = arith.constant 0 : i32
    return %c0_i32, %c0_i32_0 : i32, i32
  }
  func.func @transform_4(%arg0: i32, %arg1: memref<1xi32, #tpu.memory_space<smem>>) -> (i32, i32) {
    %c0_i32 = arith.constant 0 : i32
    %c0_i32_0 = arith.constant 0 : i32
    %c0_i32_1 = arith.constant 0 : i32
    return %c0_i32, %c0_i32_0 : i32, i32
  }
  func.func @transform_5(%arg0: i32, %arg1: memref<1xi32, #tpu.memory_space<smem>>) -> (i32, i32) {
    %c0_i32 = arith.constant 0 : i32
    %c0_i32_0 = arith.constant 0 : i32
    %c0_i32_1 = arith.constant 0 : i32
    return %c0_i32, %c0_i32_0 : i32, i32
  }
  func.func @transform_6(%arg0: i32, %arg1: memref<1xi32, #tpu.memory_space<smem>>) -> (i32, i32) {
    %c0_i32 = arith.constant 0 : i32
    %c0_i32_0 = arith.constant 0 : i32
    %c0_i32_1 = arith.constant 0 : i32
    return %c0_i32, %c0_i32_0 : i32, i32
  }
  func.func @transform_7(%arg0: i32, %arg1: memref<1xi32, #tpu.memory_space<smem>>) -> (i32, i32) {
    %c0_i32 = arith.constant 0 : i32
    %c0_i32_0 = arith.constant 0 : i32
    %c0_i32_1 = arith.constant 0 : i32
    return %c0_i32, %c0_i32_0 : i32, i32
  }
  func.func @transform_8(%arg0: i32, %arg1: memref<1xi32, #tpu.memory_space<smem>>) -> (i32, i32) {
    %c0_i32 = arith.constant 0 : i32
    %c0_i32_0 = arith.constant 0 : i32
    %c0_i32_1 = arith.constant 0 : i32
    return %c0_i32, %c0_i32_0 : i32, i32
  }
  func.func @transform_9(%arg0: i32, %arg1: memref<1xi32, #tpu.memory_space<smem>>) -> (i32, i32) {
    %c0_i32 = arith.constant 0 : i32
    %c0_i32_0 = arith.constant 0 : i32
    return %arg0, %c0_i32 : i32, i32
  }
}

</mosaic_0001>

<llo_original>
// kernel: tpu_custom_call.1
$region0: #{tpu_custom_call.1}
  #allocation0 [shape = 'u32[]', space=smem, size = 0x4, offset = 0x4, fixed_abs, tag = 'smem constant byte address 0x4 - core index']
  #allocation1 [shape = 'u32[72,128]{1,0:T(1,128)}', space=vmem, size = 0x9000, scoped, tag = 'internal scratch']
  #allocation2 [shape = 's32[1]{0}', space=sflag, size = 0x4, scoped, tag = 'scoped memory for tpu_custom_call.1']
  #allocation3 [shape = 's32[1]{0:T(128)S(6)}', space=smem, size = 0x200, scoped, tag = 'prefetched SMEM operand 0']
  %s0 = inlined_call_operand.<no memory space> [shape: s32[1], index: 0, kind: input, shape index: {}]
  %s1 = inlined_call_operand.hbm [shape: f32[16,784], index: 1, kind: input, shape index: {}]
  %s2 = inlined_call_operand.hbm [shape: bf16[784,256], index: 2, kind: input, shape index: {}]
  %s3 = inlined_call_operand.vmem [shape: f32[1,256], index: 3, kind: input, shape index: {}]
  %s4 = inlined_call_operand.hbm [shape: bf16[256,128], index: 4, kind: input, shape index: {}]
  %s5 = inlined_call_operand.vmem [shape: f32[1,128], index: 5, kind: input, shape index: {}]
  %s6 = inlined_call_operand.hbm [shape: bf16[128,128], index: 6, kind: input, shape index: {}]
  %s7 = inlined_call_operand.vmem [shape: f32[1,128], index: 7, kind: input, shape index: {}]
  %s8 = inlined_call_operand.hbm [shape: bf16[128,128], index: 8, kind: input, shape index: {}]
  %s9 = inlined_call_operand.vmem [shape: f32[1,128], index: 9, kind: input, shape index: {}]
  %s10 = inlined_call_operand.hbm [shape: f32[16,128], index: 10, kind: output, shape index: {}]
  %s11 = sld [smem:[#allocation0]]
  $region66: #{tpu_custom_call.1} parent=0
    _
  %s13 = ssub.s32 1, %s11
  %s14 = scalar_select 0, %s13, %s11
  %15 = sst [smem:[#allocation3]] %s0
  $region1: #{tpu_custom_call.1} parent=0
    #allocation4 [shape = 'u8[57344]{0}', space=vmem, size = 0xe000, scoped, tag = 'input window, operand 1, single buffered']
    #allocation5 [shape = 's32[1]{0}', space=sflag, size = 0x4, scoped, tag = 'scoped memory for tpu_custom_call.1']
    #allocation6 [shape = 's32[1]{0}', space=sflag, size = 0x4, scoped, tag = 'scoped memory for tpu_custom_call.1']
    #allocation7 [shape = 'u8[401408]{0}', space=vmem, size = 0x62000, scoped, tag = 'input window, operand 2, single buffered']
    #allocation8 [shape = 's32[1]{0}', space=sflag, size = 0x4, scoped, tag = 'scoped memory for tpu_custom_call.1']
    #allocation9 [shape = 'u8[65536]{0}', space=vmem, size = 0x10000, scoped, tag = 'input window, operand 4, single buffered']
    #allocation10 [shape = 'u8[32768]{0}', space=vmem, size = 0x8000, scoped, tag = 'input window, operand 6, single buffered']
    #allocation11 [shape = 's32[1]{0}', space=sflag, size = 0x4, scoped, tag = 'scoped memory for tpu_custom_call.1']
    #allocation12 [shape = 'u8[32768]{0}', space=vmem, size = 0x8000, scoped, tag = 'input window, operand 8, single buffered']
    #allocation13 [shape = 'u8[8192]{0}', space=vmem, size = 0x2000, scoped, tag = 'output window, operand 0, single buffered']
    %16 = vsyncpa [#allocation5], 0
    %17 = vsyncpa [#allocation8], 0
    %18 = vsyncpa [#allocation11], 0
    %19 = vsyncpa [#allocation6], 0
    // Predicated region
    $region2: #{tpu_custom_call.1} parent=1 // pred_check
      _
    $region3: #{tpu_custom_call.1} parent=1 // pred_check_branch
      %21 = sbr.rel (0) target = $region5
    $region4: #{tpu_custom_call.1} parent=1 // pred_region
      %23 = vsyncadd [#allocation5], 0
      %s24 = sshll.u32 %s1, 4
      %s25 = int_to_ptr.hbm [resolvable:$true] %s24
      %s26 = sshll.u32 [#allocation4], 4
      %s27 = int_to_ptr.vmem [resolvable:$true] %s26
      %32 = dma.hbm_to_vmem [thread:$0]  %s25, 1792, %s27, [#allocation5], 896, 896, 56
    $region5: #{tpu_custom_call.1} parent=1 // pred_fallthru
      _
    // Predicated region
    $region6: #{tpu_custom_call.1} parent=1 // pred_check
      _
    $region7: #{tpu_custom_call.1} parent=1 // pred_check_branch
      %34 = sbr.rel (0) target = $region9
    $region8: #{tpu_custom_call.1} parent=1 // pred_region
      %36 = vsyncadd [#allocation8], 0
      %s37 = sshll.u32 %s2, 4
      %s38 = int_to_ptr.hbm [resolvable:$true] %s37
      %s39 = sshll.u32 [#allocation7], 4
      %s40 = int_to_ptr.vmem [resolvable:$true] %s39
      %45 = dma.hbm_to_vmem [thread:$0]  %s38, 12544, %s40, [#allocation8], 128, 128, 8
    $region9: #{tpu_custom_call.1} parent=1 // pred_fallthru
      _
    // Predicated region
    $region10: #{tpu_custom_call.1} parent=1 // pred_check
      _
    $region11: #{tpu_custom_call.1} parent=1 // pred_check_branch
      %47 = sbr.rel (0) target = $region13
    $region12: #{tpu_custom_call.1} parent=1 // pred_region
      _
    $region13: #{tpu_custom_call.1} parent=1 // pred_fallthru
      _
    // Predicated region
    $region14: #{tpu_custom_call.1} parent=1 // pred_check
      _
    $region15: #{tpu_custom_call.1} parent=1 // pred_check_branch
      %49 = sbr.rel (0) target = $region17
    $region16: #{tpu_custom_call.1} parent=1 // pred_region
      %51 = vsyncadd [#allocation8], 0
      %s52 = sshll.u32 %s4, 4
      %s53 = int_to_ptr.hbm [resolvable:$true] %s52
      %s54 = sshll.u32 [#allocation9], 4
      %s55 = int_to_ptr.vmem [resolvable:$true] %s54
      %60 = dma.hbm_to_vmem [thread:$0]  %s53, 2048, %s55, [#allocation8], 64, 64, 4
    $region17: #{tpu_custom_call.1} parent=1 // pred_fallthru
      _
    // Predicated region
    $region18: #{tpu_custom_call.1} parent=1 // pred_check
      _
    $region19: #{tpu_custom_call.1} parent=1 // pred_check_branch
      %62 = sbr.rel (0) target = $region21
    $region20: #{tpu_custom_call.1} parent=1 // pred_region
      _
    $region21: #{tpu_custom_call.1} parent=1 // pred_fallthru
      _
    // Predicated region
    $region22: #{tpu_custom_call.1} parent=1 // pred_check
      _
    $region23: #{tpu_custom_call.1} parent=1 // pred_check_branch
      %64 = sbr.rel (0) target = $region25
    $region24: #{tpu_custom_call.1} parent=1 // pred_region
      %66 = vsyncadd [#allocation11], 0
      %s67 = sshll.u32 %s6, 4
      %s68 = int_to_ptr.hbm [resolvable:$true] %s67
      %s69 = sshll.u32 [#allocation10], 4
      %s70 = int_to_ptr.vmem [resolvable:$true] %s69
      %75 = dma.hbm_to_vmem [thread:$0]  %s68, 1024, %s70, [#allocation11], 64, 64, 4
    $region25: #{tpu_custom_call.1} parent=1 // pred_fallthru
      _
    // Predicated region
    $region26: #{tpu_custom_call.1} parent=1 // pred_check
      _
    $region27: #{tpu_custom_call.1} parent=1 // pred_check_branch
      %77 = sbr.rel (0) target = $region29
    $region28: #{tpu_custom_call.1} parent=1 // pred_region
      _
    $region29: #{tpu_custom_call.1} parent=1 // pred_fallthru
      _
    // Predicated region
    $region30: #{tpu_custom_call.1} parent=1 // pred_check
      _
    $region31: #{tpu_custom_call.1} parent=1 // pred_check_branch
      %79 = sbr.rel (0) target = $region33
    $region32: #{tpu_custom_call.1} parent=1 // pred_region
      %81 = vsyncadd [#allocation11], 0
      %s82 = sshll.u32 %s8, 4
      %s83 = int_to_ptr.hbm [resolvable:$true] %s82
      %s84 = sshll.u32 [#allocation12], 4
      %s85 = int_to_ptr.vmem [resolvable:$true] %s84
      %90 = dma.hbm_to_vmem [thread:$0]  %s83, 1024, %s85, [#allocation11], 64, 64, 4
    $region33: #{tpu_custom_call.1} parent=1 // pred_fallthru
      _
    // Predicated region
    $region34: #{tpu_custom_call.1} parent=1 // pred_check
      _
    $region35: #{tpu_custom_call.1} parent=1 // pred_check_branch
      %92 = sbr.rel (0) target = $region37
    $region36: #{tpu_custom_call.1} parent=1 // pred_region
      _
    $region37: #{tpu_custom_call.1} parent=1 // pred_fallthru
      _
    // Predicated region
    $region38: #{tpu_custom_call.1} parent=1 // pred_check
      _
    $region39: #{tpu_custom_call.1} parent=1 // pred_check_branch
      %94 = sbr.rel (0) target = $region41
    $region40: #{tpu_custom_call.1} parent=1 // pred_region
      %96 = dma.done [#allocation5], 1792
    $region41: #{tpu_custom_call.1} parent=1 // pred_fallthru
      _
    // Predicated region
    $region42: #{tpu_custom_call.1} parent=1 // pred_check
      _
    $region43: #{tpu_custom_call.1} parent=1 // pred_check_branch
      %98 = sbr.rel (0) target = $region45
    $region44: #{tpu_custom_call.1} parent=1 // pred_region
      %100 = dma.done [#allocation8], 12544
    $region45: #{tpu_custom_call.1} parent=1 // pred_fallthru
      _
    // Predicated region
    $region46: #{tpu_custom_call.1} parent=1 // pred_check
      _
    $region47: #{tpu_custom_call.1} parent=1 // pred_check_branch
      %102 = sbr.rel (0) target = $region49
    $region48: #{tpu_custom_call.1} parent=1 // pred_region
      %104 = dma.done [#allocation8], 2048
    $region49: #{tpu_custom_call.1} parent=1 // pred_fallthru
      _
    // Predicated region
    $region50: #{tpu_custom_call.1} parent=1 // pred_check
      _
    $region51: #{tpu_custom_call.1} parent=1 // pred_check_branch
      %106 = sbr.rel (0) target = $region53
    $region52: #{tpu_custom_call.1} parent=1 // pred_region
      %108 = dma.done [#allocation11], 1024
    $region53: #{tpu_custom_call.1} parent=1 // pred_fallthru
      _
    // Predicated region
    $region54: #{tpu_custom_call.1} parent=1 // pred_check
      _
    $region55: #{tpu_custom_call.1} parent=1 // pred_check_branch
      %110 = sbr.rel (0) target = $region57
    $region56: #{tpu_custom_call.1} parent=1 // pred_region
      %112 = dma.done [#allocation11], 1024
    $region57: #{tpu_custom_call.1} parent=1 // pred_fallthru
      _
    %v114 = vld [vmem:[#allocation4] sm:$0xff]
    %v115 = vld [vmem:[#allocation4 + $0x8] sm:$0xff]
    %v116 = vld [vmem:[#allocation4 + $0x10] sm:$0xff]
    %v117 = vld [vmem:[#allocation4 + $0x18] sm:$0xff]
    %v118 = vld [vmem:[#allocation4 + $0x20] sm:$0xff]
    %v119 = vld [vmem:[#allocation4 + $0x28] sm:$0xff]
    %v120 = vld [vmem:[#allocation4 + $0x30] sm:$0xff]
    %v121 = vld [vmem:[#allocation4 + $0x38] sm:$0xff]
    %v122 = vld [vmem:[#allocation4 + $0x40] sm:$0xff]
    %v123 = vld [vmem:[#allocation4 + $0x48] sm:$0xff]
    %v124 = vld [vmem:[#allocation4 + $0x50] sm:$0xff]
    %v125 = vld [vmem:[#allocation4 + $0x58] sm:$0xff]
    %v126 = vld [vmem:[#allocation4 + $0x60] sm:$0xff]
    %v127 = vld [vmem:[#allocation4 + $0x68] sm:$0xff]
    %v128 = vpack.c.bf16 %v121, %v114
    %v129 = vpack.c.bf16 %v122, %v115
    %v130 = vpack.c.bf16 %v123, %v116
    %v131 = vpack.c.bf16 %v124, %v117
    %v132 = vpack.c.bf16 %v125, %v118
    %v133 = vpack.c.bf16 %v126, %v119
    %v134 = vpack.c.bf16 %v127, %v120
    %v135 = vld [vmem:[#allocation7] sm:$0xff]
    %v136 = vld [vmem:[#allocation7 + $0x8] sm:$0xff]
    %v137 = vld [vmem:[#allocation7 + $0x10] sm:$0xff]
    %v138 = vld [vmem:[#allocation7 + $0x18] sm:$0xff]
    %v139 = vld [vmem:[#allocation7 + $0x20] sm:$0xff]
    %v140 = vld [vmem:[#allocation7 + $0x28] sm:$0xff]
    %v141 = vld [vmem:[#allocation7 + $0x30] sm:$0xff]
    %v142 = vld [vmem:[#allocation7 + $0x38] sm:$0xff]
    %v143 = vld [vmem:[#allocation7 + $0x40] sm:$0xff]
    %v144 = vld [vmem:[#allocation7 + $0x48] sm:$0xff]
    %v145 = vld [vmem:[#allocation7 + $0x50] sm:$0xff]
    %v146 = vld [vmem:[#allocation7 + $0x58] sm:$0xff]
    %v147 = vld [vmem:[#allocation7 + $0x60] sm:$0xff]
    %v148 = vld [vmem:[#allocation7 + $0x68] sm:$0xff]
    %v149 = vld [vmem:[#allocation7 + $0x70] sm:$0xff]
    %v150 = vld [vmem:[#allocation7 + $0x78] sm:$0xff]
    %v151 = vld [vmem:[#allocation7 + $0x80] sm:$0xff]
    %v152 = vld [vmem:[#allocation7 + $0x88] sm:$0xff]
    %v153 = vld [vmem:[#allocation7 + $0x90] sm:$0xff]
    %v154 = vld [vmem:[#allocation7 + $0x98] sm:$0xff]
    %v155 = vld [vmem:[#allocation7 + $0xa0] sm:$0xff]
    %v156 = vld [vmem:[#allocation7 + $0xa8] sm:$0xff]
    %v157 = vld [vmem:[#allocation7 + $0xb0] sm:$0xff]
    %v158 = vld [vmem:[#allocation7 + $0xb8] sm:$0xff]
    %v159 = vld [vmem:[#allocation7 + $0xc0] sm:$0xff]
    %v160 = vld [vmem:[#allocation7 + $0xc8] sm:$0xff]
    %v161 = vld [vmem:[#allocation7 + $0xd0] sm:$0xff]
    %v162 = vld [vmem:[#allocation7 + $0xd8] sm:$0xff]
    %v163 = vld [vmem:[#allocation7 + $0xe0] sm:$0xff]
    %v164 = vld [vmem:[#allocation7 + $0xe8] sm:$0xff]
    %v165 = vld [vmem:[#allocation7 + $0xf0] sm:$0xff]
    %v166 = vld [vmem:[#allocation7 + $0xf8] sm:$0xff]
    %v167 = vld [vmem:[#allocation7 + $0x100] sm:$0xff]
    %v168 = vld [vmem:[#allocation7 + $0x108] sm:$0xff]
    %v169 = vld [vmem:[#allocation7 + $0x110] sm:$0xff]
    %v170 = vld [vmem:[#allocation7 + $0x118] sm:$0xff]
    %v171 = vld [vmem:[#allocation7 + $0x120] sm:$0xff]
    %v172 = vld [vmem:[#allocation7 + $0x128] sm:$0xff]
    %v173 = vld [vmem:[#allocation7 + $0x130] sm:$0xff]
    %v174 = vld [vmem:[#allocation7 + $0x138] sm:$0xff]
    %v175 = vld [vmem:[#allocation7 + $0x140] sm:$0xff]
    %v176 = vld [vmem:[#allocation7 + $0x148] sm:$0xff]
    %v177 = vld [vmem:[#allocation7 + $0x150] sm:$0xff]
    %v178 = vld [vmem:[#allocation7 + $0x158] sm:$0xff]
    %v179 = vld [vmem:[#allocation7 + $0x160] sm:$0xff]
    %v180 = vld [vmem:[#allocation7 + $0x168] sm:$0xff]
    %v181 = vld [vmem:[#allocation7 + $0x170] sm:$0xff]
    %v182 = vld [vmem:[#allocation7 + $0x178] sm:$0xff]
    %v183 = vld [vmem:[#allocation7 + $0x180] sm:$0xff]
    %v184 = vld [vmem:[#allocation7 + $0x188] sm:$0xff]
    %v185 = vld [vmem:[#allocation7 + $0x190] sm:$0xff]
    %v186 = vld [vmem:[#allocation7 + $0x198] sm:$0xff]
    %v187 = vld [vmem:[#allocation7 + $0x1a0] sm:$0xff]
    %v188 = vld [vmem:[#allocation7 + $0x1a8] sm:$0xff]
    %v189 = vld [vmem:[#allocation7 + $0x1b0] sm:$0xff]
    %v190 = vld [vmem:[#allocation7 + $0x1b8] sm:$0xff]
    %v191 = vld [vmem:[#allocation7 + $0x1c0] sm:$0xff]
    %v192 = vld [vmem:[#allocation7 + $0x1c8] sm:$0xff]
    %v193 = vld [vmem:[#allocation7 + $0x1d0] sm:$0xff]
    %v194 = vld [vmem:[#allocation7 + $0x1d8] sm:$0xff]
    %v195 = vld [vmem:[#allocation7 + $0x1e0] sm:$0xff]
    %v196 = vld [vmem:[#allocation7 + $0x1e8] sm:$0xff]
    %v197 = vld [vmem:[#allocation7 + $0x1f0] sm:$0xff]
    %v198 = vld [vmem:[#allocation7 + $0x1f8] sm:$0xff]
    %v199 = vld [vmem:[#allocation7 + $0x200] sm:$0xff]
    %v200 = vld [vmem:[#allocation7 + $0x208] sm:$0xff]
    %v201 = vld [vmem:[#allocation7 + $0x210] sm:$0xff]
    %v202 = vld [vmem:[#allocation7 + $0x218] sm:$0xff]
    %v203 = vld [vmem:[#allocation7 + $0x220] sm:$0xff]
    %v204 = vld [vmem:[#allocation7 + $0x228] sm:$0xff]
    %v205 = vld [vmem:[#allocation7 + $0x230] sm:$0xff]
    %v206 = vld [vmem:[#allocation7 + $0x238] sm:$0xff]
    %v207 = vld [vmem:[#allocation7 + $0x240] sm:$0xff]
    %v208 = vld [vmem:[#allocation7 + $0x248] sm:$0xff]
    %v209 = vld [vmem:[#allocation7 + $0x250] sm:$0xff]
    %v210 = vld [vmem:[#allocation7 + $0x258] sm:$0xff]
    %v211 = vld [vmem:[#allocation7 + $0x260] sm:$0xff]
    %v212 = vld [vmem:[#allocation7 + $0x268] sm:$0xff]
    %v213 = vld [vmem:[#allocation7 + $0x270] sm:$0xff]
    %v214 = vld [vmem:[#allocation7 + $0x278] sm:$0xff]
    %v215 = vld [vmem:[#allocation7 + $0x280] sm:$0xff]
    %v216 = vld [vmem:[#allocation7 + $0x288] sm:$0xff]
    %v217 = vld [vmem:[#allocation7 + $0x290] sm:$0xff]
    %v218 = vld [vmem:[#allocation7 + $0x298] sm:$0xff]
    %v219 = vld [vmem:[#allocation7 + $0x2a0] sm:$0xff]
    %v220 = vld [vmem:[#allocation7 + $0x2a8] sm:$0xff]
    %v221 = vld [vmem:[#allocation7 + $0x2b0] sm:$0xff]
    %v222 = vld [vmem:[#allocation7 + $0x2b8] sm:$0xff]
    %v223 = vld [vmem:[#allocation7 + $0x2c0] sm:$0xff]
    %v224 = vld [vmem:[#allocation7 + $0x2c8] sm:$0xff]
    %v225 = vld [vmem:[#allocation7 + $0x2d0] sm:$0xff]
    %v226 = vld [vmem:[#allocation7 + $0x2d8] sm:$0xff]
    %v227 = vld [vmem:[#allocation7 + $0x2e0] sm:$0xff]
    %v228 = vld [vmem:[#allocation7 + $0x2e8] sm:$0xff]
    %v229 = vld [vmem:[#allocation7 + $0x2f0] sm:$0xff]
    %v230 = vld [vmem:[#allocation7 + $0x2f8] sm:$0xff]
    %v231 = vld [vmem:[#allocation7 + $0x300] sm:$0xff]
    %v232 = vld [vmem:[#allocation7 + $0x308] sm:$0xff]
    %v233 = vld [vmem:[%s3] sm:$0x3]
    %v235 = vperm.slane %v233, 0
    %v236 = vperm.slane %v233, 1
    %v337 = vunpack.c.l.b16 %v135
    %v338 = vunpack.c.h.b16 %v135
    %v339 = vunpack.c.l.b16 %v136
    %v340 = vunpack.c.h.b16 %v136
    %v341 = vunpack.c.l.b16 %v137
    %v342 = vunpack.c.h.b16 %v137
    %v343 = vunpack.c.l.b16 %v138
    %v344 = vunpack.c.h.b16 %v138
    %v345 = vunpack.c.l.b16 %v139
    %v346 = vunpack.c.h.b16 %v139
    %v347 = vunpack.c.l.b16 %v140
    %v348 = vunpack.c.h.b16 %v140
    %v349 = vunpack.c.l.b16 %v141
    %v350 = vunpack.c.h.b16 %v141
    %v351 = vunpack.c.l.b16 %v142
    %v352 = vunpack.c.h.b16 %v142
    %v353 = vunpack.c.l.b16 %v143
    %v354 = vunpack.c.h.b16 %v143
    %v355 = vunpack.c.l.b16 %v144
    %v356 = vunpack.c.h.b16 %v144
    %v357 = vunpack.c.l.b16 %v145
    %v358 = vunpack.c.h.b16 %v145
    %v359 = vunpack.c.l.b16 %v146
    %v360 = vunpack.c.h.b16 %v146
    %v361 = vunpack.c.l.b16 %v147
    %v362 = vunpack.c.h.b16 %v147
    %v363 = vunpack.c.l.b16 %v148
    %v364 = vunpack.c.h.b16 %v148
    %v365 = vunpack.c.l.b16 %v149
    %v366 = vunpack.c.h.b16 %v149
    %v367 = vunpack.c.l.b16 %v150
    %v368 = vunpack.c.h.b16 %v150
    %v369 = vunpack.c.l.b16 %v151
    %v370 = vunpack.c.h.b16 %v151
    %v371 = vunpack.c.l.b16 %v152
    %v372 = vunpack.c.h.b16 %v152
    %v373 = vunpack.c.l.b16 %v153
    %v374 = vunpack.c.h.b16 %v153
    %v375 = vunpack.c.l.b16 %v154
    %v376 = vunpack.c.h.b16 %v154
    %v377 = vunpack.c.l.b16 %v155
    %v378 = vunpack.c.h.b16 %v155
    %v379 = vunpack.c.l.b16 %v156
    %v380 = vunpack.c.h.b16 %v156
    %v381 = vunpack.c.l.b16 %v157
    %v382 = vunpack.c.h.b16 %v157
    %v383 = vunpack.c.l.b16 %v158
    %v384 = vunpack.c.h.b16 %v158
    %v385 = vunpack.c.l.b16 %v159
    %v386 = vunpack.c.h.b16 %v159
    %v387 = vunpack.c.l.b16 %v160
    %v388 = vunpack.c.h.b16 %v160
    %v389 = vunpack.c.l.b16 %v161
    %v390 = vunpack.c.h.b16 %v161
    %v391 = vunpack.c.l.b16 %v162
    %v392 = vunpack.c.h.b16 %v162
    %v393 = vunpack.c.l.b16 %v163
    %v394 = vunpack.c.h.b16 %v163
    %v395 = vunpack.c.l.b16 %v164
    %v396 = vunpack.c.h.b16 %v164
    %v397 = vunpack.c.l.b16 %v165
    %v398 = vunpack.c.h.b16 %v165
    %v399 = vunpack.c.l.b16 %v166
    %v400 = vunpack.c.h.b16 %v166
    %v401 = vunpack.c.l.b16 %v167
    %v402 = vunpack.c.h.b16 %v167
    %v403 = vunpack.c.l.b16 %v168
    %v404 = vunpack.c.h.b16 %v168
    %v405 = vunpack.c.l.b16 %v169
    %v406 = vunpack.c.h.b16 %v169
    %v407 = vunpack.c.l.b16 %v170
    %v408 = vunpack.c.h.b16 %v170
    %v409 = vunpack.c.l.b16 %v171
    %v410 = vunpack.c.h.b16 %v171
    %v411 = vunpack.c.l.b16 %v172
    %v412 = vunpack.c.h.b16 %v172
    %v413 = vunpack.c.l.b16 %v173
    %v414 = vunpack.c.h.b16 %v173
    %v415 = vunpack.c.l.b16 %v174
    %v416 = vunpack.c.h.b16 %v174
    %v417 = vunpack.c.l.b16 %v175
    %v418 = vunpack.c.h.b16 %v175
    %v419 = vunpack.c.l.b16 %v176
    %v420 = vunpack.c.h.b16 %v176
    %v421 = vunpack.c.l.b16 %v177
    %v422 = vunpack.c.h.b16 %v177
    %v423 = vunpack.c.l.b16 %v178
    %v424 = vunpack.c.h.b16 %v178
    %v425 = vunpack.c.l.b16 %v179
    %v426 = vunpack.c.h.b16 %v179
    %v427 = vunpack.c.l.b16 %v180
    %v428 = vunpack.c.h.b16 %v180
    %v429 = vunpack.c.l.b16 %v181
    %v430 = vunpack.c.h.b16 %v181
    %v431 = vunpack.c.l.b16 %v182
    %v432 = vunpack.c.h.b16 %v182
    %v433 = vunpack.c.l.b16 %v183
    %v434 = vunpack.c.h.b16 %v183
    %v435 = vunpack.c.l.b16 %v184
    %v436 = vunpack.c.h.b16 %v184
    %v437 = vunpack.c.l.b16 %v185
    %v438 = vunpack.c.h.b16 %v185
    %v439 = vunpack.c.l.b16 %v186
    %v440 = vunpack.c.h.b16 %v186
    %v441 = vunpack.c.l.b16 %v187
    %v442 = vunpack.c.h.b16 %v187
    %v443 = vunpack.c.l.b16 %v188
    %v444 = vunpack.c.h.b16 %v188
    %v445 = vunpack.c.l.b16 %v189
    %v446 = vunpack.c.h.b16 %v189
    %v447 = vunpack.c.l.b16 %v190
    %v448 = vunpack.c.h.b16 %v190
    %v449 = vunpack.c.l.b16 %v191
    %v450 = vunpack.c.h.b16 %v191
    %v451 = vunpack.c.l.b16 %v192
    %v452 = vunpack.c.h.b16 %v192
    %v453 = vunpack.c.l.b16 %v193
    %v454 = vunpack.c.h.b16 %v193
    %v455 = vunpack.c.l.b16 %v194
    %v456 = vunpack.c.h.b16 %v194
    %v457 = vunpack.c.l.b16 %v195
    %v458 = vunpack.c.h.b16 %v195
    %v459 = vunpack.c.l.b16 %v196
    %v460 = vunpack.c.h.b16 %v196
    %v461 = vunpack.c.l.b16 %v197
    %v462 = vunpack.c.h.b16 %v197
    %v463 = vunpack.c.l.b16 %v198
    %v464 = vunpack.c.h.b16 %v198
    %v465 = vunpack.c.l.b16 %v199
    %v466 = vunpack.c.h.b16 %v199
    %v467 = vunpack.c.l.b16 %v200
    %v468 = vunpack.c.h.b16 %v200
    %v469 = vunpack.c.l.b16 %v201
    %v470 = vunpack.c.h.b16 %v201
    %v471 = vunpack.c.l.b16 %v202
    %v472 = vunpack.c.h.b16 %v202
    %v473 = vunpack.c.l.b16 %v203
    %v474 = vunpack.c.h.b16 %v203
    %v475 = vunpack.c.l.b16 %v204
    %v476 = vunpack.c.h.b16 %v204
    %v477 = vunpack.c.l.b16 %v205
    %v478 = vunpack.c.h.b16 %v205
    %v479 = vunpack.c.l.b16 %v206
    %v480 = vunpack.c.h.b16 %v206
    %v481 = vunpack.c.l.b16 %v207
    %v482 = vunpack.c.h.b16 %v207
    %v483 = vunpack.c.l.b16 %v208
    %v484 = vunpack.c.h.b16 %v208
    %v485 = vunpack.c.l.b16 %v209
    %v486 = vunpack.c.h.b16 %v209
    %v487 = vunpack.c.l.b16 %v210
    %v488 = vunpack.c.h.b16 %v210
    %v489 = vunpack.c.l.b16 %v211
    %v490 = vunpack.c.h.b16 %v211
    %v491 = vunpack.c.l.b16 %v212
    %v492 = vunpack.c.h.b16 %v212
    %v493 = vunpack.c.l.b16 %v213
    %v494 = vunpack.c.h.b16 %v213
    %v495 = vunpack.c.l.b16 %v214
    %v496 = vunpack.c.h.b16 %v214
    %v497 = vunpack.c.l.b16 %v215
    %v498 = vunpack.c.h.b16 %v215
    %v499 = vunpack.c.l.b16 %v216
    %v500 = vunpack.c.h.b16 %v216
    %v501 = vunpack.c.l.b16 %v217
    %v502 = vunpack.c.h.b16 %v217
    %v503 = vunpack.c.l.b16 %v218
    %v504 = vunpack.c.h.b16 %v218
    %v505 = vunpack.c.l.b16 %v219
    %v506 = vunpack.c.h.b16 %v219
    %v507 = vunpack.c.l.b16 %v220
    %v508 = vunpack.c.h.b16 %v220
    %v509 = vunpack.c.l.b16 %v221
    %v510 = vunpack.c.h.b16 %v221
    %v511 = vunpack.c.l.b16 %v222
    %v512 = vunpack.c.h.b16 %v222
    %v513 = vunpack.c.l.b16 %v223
    %v514 = vunpack.c.h.b16 %v223
    %v515 = vunpack.c.l.b16 %v224
    %v516 = vunpack.c.h.b16 %v224
    %v517 = vunpack.c.l.b16 %v225
    %v518 = vunpack.c.h.b16 %v225
    %v519 = vunpack.c.l.b16 %v226
    %v520 = vunpack.c.h.b16 %v226
    %v521 = vunpack.c.l.b16 %v227
    %v522 = vunpack.c.h.b16 %v227
    %v523 = vunpack.c.l.b16 %v228
    %v524 = vunpack.c.h.b16 %v228
    %v525 = vunpack.c.l.b16 %v229
    %v526 = vunpack.c.h.b16 %v229
    %v527 = vunpack.c.l.b16 %v230
    %v528 = vunpack.c.h.b16 %v230
    %v529 = vunpack.c.l.b16 %v231
    %v530 = vunpack.c.h.b16 %v231
    %v531 = vunpack.c.l.b16 %v232
    %v532 = vunpack.c.h.b16 %v232
    %v533 = vpack.c.b16 %v339, %v337
    %v534 = vpack.c.b16 %v340, %v338
    %v535 = vpack.c.b16 %v343, %v341
    %v536 = vpack.c.b16 %v344, %v342
    %v537 = vpack.c.b16 %v347, %v345
    %v538 = vpack.c.b16 %v348, %v346
    %v539 = vpack.c.b16 %v351, %v349
    %v540 = vpack.c.b16 %v352, %v350
    %v541 = vpack.c.b16 %v355, %v353
    %v542 = vpack.c.b16 %v356, %v354
    %v543 = vpack.c.b16 %v359, %v357
    %v544 = vpack.c.b16 %v360, %v358
    %v545 = vpack.c.b16 %v363, %v361
    %v546 = vpack.c.b16 %v364, %v362
    %v547 = vpack.c.b16 %v367, %v365
    %v548 = vpack.c.b16 %v368, %v366
    %v549 = vpack.c.b16 %v371, %v369
    %v550 = vpack.c.b16 %v372, %v370
    %v551 = vpack.c.b16 %v375, %v373
    %v552 = vpack.c.b16 %v376, %v374
    %v553 = vpack.c.b16 %v379, %v377
    %v554 = vpack.c.b16 %v380, %v378
    %v555 = vpack.c.b16 %v383, %v381
    %v556 = vpack.c.b16 %v384, %v382
    %v557 = vpack.c.b16 %v387, %v385
    %v558 = vpack.c.b16 %v388, %v386
    %v559 = vpack.c.b16 %v391, %v389
    %v560 = vpack.c.b16 %v392, %v390
    %v561 = vpack.c.b16 %v395, %v393
    %v562 = vpack.c.b16 %v396, %v394
    %v563 = vpack.c.b16 %v399, %v397
    %v564 = vpack.c.b16 %v400, %v398
    %v565 = vpack.c.b16 %v403, %v401
    %v566 = vpack.c.b16 %v404, %v402
    %v567 = vpack.c.b16 %v407, %v405
    %v568 = vpack.c.b16 %v408, %v406
    %v569 = vpack.c.b16 %v411, %v409
    %v570 = vpack.c.b16 %v412, %v410
    %v571 = vpack.c.b16 %v415, %v413
    %v572 = vpack.c.b16 %v416, %v414
    %v573 = vpack.c.b16 %v419, %v417
    %v574 = vpack.c.b16 %v420, %v418
    %v575 = vpack.c.b16 %v423, %v421
    %v576 = vpack.c.b16 %v424, %v422
    %v577 = vpack.c.b16 %v427, %v425
    %v578 = vpack.c.b16 %v428, %v426
    %v579 = vpack.c.b16 %v431, %v429
    %v580 = vpack.c.b16 %v432, %v430
    %v581 = vpack.c.b16 %v435, %v433
    %v582 = vpack.c.b16 %v436, %v434
    %v583 = vpack.c.b16 %v439, %v437
    %v584 = vpack.c.b16 %v440, %v438
    %v585 = vpack.c.b16 %v443, %v441
    %v586 = vpack.c.b16 %v444, %v442
    %v587 = vpack.c.b16 %v447, %v445
    %v588 = vpack.c.b16 %v448, %v446
    %v589 = vpack.c.b16 %v451, %v449
    %v590 = vpack.c.b16 %v452, %v450
    %v591 = vpack.c.b16 %v455, %v453
    %v592 = vpack.c.b16 %v456, %v454
    %v593 = vpack.c.b16 %v459, %v457
    %v594 = vpack.c.b16 %v460, %v458
    %v595 = vpack.c.b16 %v463, %v461
    %v596 = vpack.c.b16 %v464, %v462
    %v597 = vpack.c.b16 %v467, %v465
    %v598 = vpack.c.b16 %v468, %v466
    %v599 = vpack.c.b16 %v471, %v469
    %v600 = vpack.c.b16 %v472, %v470
    %v601 = vpack.c.b16 %v475, %v473
    %v602 = vpack.c.b16 %v476, %v474
    %v603 = vpack.c.b16 %v479, %v477
    %v604 = vpack.c.b16 %v480, %v478
    %v605 = vpack.c.b16 %v483, %v481
    %v606 = vpack.c.b16 %v484, %v482
    %v607 = vpack.c.b16 %v487, %v485
    %v608 = vpack.c.b16 %v488, %v486
    %v609 = vpack.c.b16 %v491, %v489
    %v610 = vpack.c.b16 %v492, %v490
    %v611 = vpack.c.b16 %v495, %v493
    %v612 = vpack.c.b16 %v496, %v494
    %v613 = vpack.c.b16 %v499, %v497
    %v614 = vpack.c.b16 %v500, %v498
    %v615 = vpack.c.b16 %v503, %v501
    %v616 = vpack.c.b16 %v504, %v502
    %v617 = vpack.c.b16 %v507, %v505
    %v618 = vpack.c.b16 %v508, %v506
    %v619 = vpack.c.b16 %v511, %v509
    %v620 = vpack.c.b16 %v512, %v510
    %v621 = vpack.c.b16 %v515, %v513
    %v622 = vpack.c.b16 %v516, %v514
    %v623 = vpack.c.b16 %v519, %v517
    %v624 = vpack.c.b16 %v520, %v518
    %v625 = vpack.c.b16 %v523, %v521
    %v626 = vpack.c.b16 %v524, %v522
    %v627 = vpack.c.b16 %v527, %v525
    %v628 = vpack.c.b16 %v528, %v526
    %v629 = vpack.c.b16 %v531, %v529
    %v630 = vpack.c.b16 %v532, %v530
    %vm729 = vcmask 130048
    %v731 = vsel %vm729, %v134, 0
    %733 = vmatpush.bf16.msra.mxu0 %v547
    %734 = vmatpush.bf16.msra.mxu0 %v545
    %735 = vmatpush.bf16.msra.mxu0 %v543
    %736 = vmatpush.bf16.msra.mxu0 %v541
    %737 = vmatpush.bf16.msra.mxu0 %v539
    %738 = vmatpush.bf16.msra.mxu0 %v537
    %739 = vmatpush.bf16.msra.mxu0 %v535
    %740 = vmatpush.bf16.msra.mxu0 %v533
    %741 = vmatmul.bf16.gmra.mxu0 %v128
    %v742 = vpop.f32.mrf.mxu0
    %v743 = vadd.f32 %v235, %v742
    %v744 = vpop.f32.mrf.mxu0
    %v745 = vadd.f32 %v235, %v744
    %746 = vdwg.mxu0
    %747 = vmatpush.bf16.msra.mxu0 %v563
    %748 = vmatpush.bf16.msra.mxu0 %v561
    %749 = vmatpush.bf16.msra.mxu0 %v559
    %750 = vmatpush.bf16.msra.mxu0 %v557
    %751 = vmatpush.bf16.msra.mxu0 %v555
    %752 = vmatpush.bf16.msra.mxu0 %v553
    %753 = vmatpush.bf16.msra.mxu0 %v551
    %754 = vmatpush.bf16.msra.mxu0 %v549
    %755 = vmatmul.bf16.gmra.mxu0 %v129
    %v756 = vpop.f32.mrf.mxu0
    %v757 = vadd.f32 %v743, %v756
    %v758 = vpop.f32.mrf.mxu0
    %v759 = vadd.f32 %v745, %v758
    %760 = vdwg.mxu0
    %761 = vmatpush.bf16.msra.mxu0 %v579
    %762 = vmatpush.bf16.msra.mxu0 %v577
    %763 = vmatpush.bf16.msra.mxu0 %v575
    %764 = vmatpush.bf16.msra.mxu0 %v573
    %765 = vmatpush.bf16.msra.mxu0 %v571
    %766 = vmatpush.bf16.msra.mxu0 %v569
    %767 = vmatpush.bf16.msra.mxu0 %v567
    %768 = vmatpush.bf16.msra.mxu0 %v565
    %769 = vmatmul.bf16.gmra.mxu0 %v130
    %v770 = vpop.f32.mrf.mxu0
    %v771 = vadd.f32 %v757, %v770
    %v772 = vpop.f32.mrf.mxu0
    %v773 = vadd.f32 %v759, %v772
    %774 = vdwg.mxu0
    %775 = vmatpush.bf16.msra.mxu0 %v595
    %776 = vmatpush.bf16.msra.mxu0 %v593
    %777 = vmatpush.bf16.msra.mxu0 %v591
    %778 = vmatpush.bf16.msra.mxu0 %v589
    %779 = vmatpush.bf16.msra.mxu0 %v587
    %780 = vmatpush.bf16.msra.mxu0 %v585
    %781 = vmatpush.bf16.msra.mxu0 %v583
    %782 = vmatpush.bf16.msra.mxu0 %v581
    %783 = vmatmul.bf16.gmra.mxu0 %v131
    %v784 = vpop.f32.mrf.mxu0
    %v785 = vadd.f32 %v771, %v784
    %v786 = vpop.f32.mrf.mxu0
    %v787 = vadd.f32 %v773, %v786
    %788 = vdwg.mxu0
    %789 = vmatpush.bf16.msra.mxu0 %v611
    %790 = vmatpush.bf16.msra.mxu0 %v609
    %791 = vmatpush.bf16.msra.mxu0 %v607
    %792 = vmatpush.bf16.msra.mxu0 %v605
    %793 = vmatpush.bf16.msra.mxu0 %v603
    %794 = vmatpush.bf16.msra.mxu0 %v601
    %795 = vmatpush.bf16.msra.mxu0 %v599
    %796 = vmatpush.bf16.msra.mxu0 %v597
    %797 = vmatmul.bf16.gmra.mxu0 %v132
    %v798 = vpop.f32.mrf.mxu0
    %v799 = vadd.f32 %v785, %v798
    %v800 = vpop.f32.mrf.mxu0
    %v801 = vadd.f32 %v787, %v800
    %802 = vdwg.mxu0
    %803 = vmatpush.bf16.msra.mxu0 %v627
    %804 = vmatpush.bf16.msra.mxu0 %v625
    %805 = vmatpush.bf16.msra.mxu0 %v623
    %806 = vmatpush.bf16.msra.mxu0 %v621
    %807 = vmatpush.bf16.msra.mxu0 %v619
    %808 = vmatpush.bf16.msra.mxu0 %v617
    %809 = vmatpush.bf16.msra.mxu0 %v615
    %810 = vmatpush.bf16.msra.mxu0 %v613
    %811 = vmatmul.bf16.gmra.mxu0 %v133
    %v812 = vpop.f32.mrf.mxu0
    %v813 = vadd.f32 %v799, %v812
    %v814 = vpop.f32.mrf.mxu0
    %v815 = vadd.f32 %v801, %v814
    %816 = vdwg.mxu0
    %817 = vmatpush.bf16.msra.mxu0 0
    %818 = vmatpush.bf16.msra.mxu0 0
    %819 = vmatpush.bf16.msra.mxu0 0
    %820 = vmatpush.bf16.msra.mxu0 0
    %821 = vmatpush.bf16.msra.mxu0 0
    %822 = vmatpush.bf16.msra.mxu0 0
    %823 = vmatpush.bf16.msra.mxu0 0
    %824 = vmatpush.bf16.msra.mxu0 %v629
    %825 = vmatmul.bf16.gmra.mxu0 %v731
    %v826 = vpop.f32.mrf.mxu0
    %v827 = vadd.f32 %v813, %v826
    %v828 = vpop.f32.mrf.mxu0
    %v829 = vadd.f32 %v815, %v828
    %830 = vdwg.mxu0
    %831 = vmatpush.bf16.msra.mxu0 %v548
    %832 = vmatpush.bf16.msra.mxu0 %v546
    %833 = vmatpush.bf16.msra.mxu0 %v544
    %834 = vmatpush.bf16.msra.mxu0 %v542
    %835 = vmatpush.bf16.msra.mxu0 %v540
    %836 = vmatpush.bf16.msra.mxu0 %v538
    %837 = vmatpush.bf16.msra.mxu0 %v536
    %838 = vmatpush.bf16.msra.mxu0 %v534
    %839 = vmatmul.bf16.gmra.mxu0 %v128
    %v840 = vpop.f32.mrf.mxu0
    %v841 = vadd.f32 %v236, %v840
    %v842 = vpop.f32.mrf.mxu0
    %v843 = vadd.f32 %v236, %v842
    %844 = vdwg.mxu0
    %845 = vmatpush.bf16.msra.mxu0 %v564
    %846 = vmatpush.bf16.msra.mxu0 %v562
    %847 = vmatpush.bf16.msra.mxu0 %v560
    %848 = vmatpush.bf16.msra.mxu0 %v558
    %849 = vmatpush.bf16.msra.mxu0 %v556
    %850 = vmatpush.bf16.msra.mxu0 %v554
    %851 = vmatpush.bf16.msra.mxu0 %v552
    %852 = vmatpush.bf16.msra.mxu0 %v550
    %853 = vmatmul.bf16.gmra.mxu0 %v129
    %v854 = vpop.f32.mrf.mxu0
    %v855 = vadd.f32 %v841, %v854
    %v856 = vpop.f32.mrf.mxu0
    %v857 = vadd.f32 %v843, %v856
    %858 = vdwg.mxu0
    %859 = vmatpush.bf16.msra.mxu0 %v580
    %860 = vmatpush.bf16.msra.mxu0 %v578
    %861 = vmatpush.bf16.msra.mxu0 %v576
    %862 = vmatpush.bf16.msra.mxu0 %v574
    %863 = vmatpush.bf16.msra.mxu0 %v572
    %864 = vmatpush.bf16.msra.mxu0 %v570
    %865 = vmatpush.bf16.msra.mxu0 %v568
    %866 = vmatpush.bf16.msra.mxu0 %v566
    %867 = vmatmul.bf16.gmra.mxu0 %v130
    %v868 = vpop.f32.mrf.mxu0
    %v869 = vadd.f32 %v855, %v868
    %v870 = vpop.f32.mrf.mxu0
    %v871 = vadd.f32 %v857, %v870
    %872 = vdwg.mxu0
    %873 = vmatpush.bf16.msra.mxu0 %v596
    %874 = vmatpush.bf16.msra.mxu0 %v594
    %875 = vmatpush.bf16.msra.mxu0 %v592
    %876 = vmatpush.bf16.msra.mxu0 %v590
    %877 = vmatpush.bf16.msra.mxu0 %v588
    %878 = vmatpush.bf16.msra.mxu0 %v586
    %879 = vmatpush.bf16.msra.mxu0 %v584
    %880 = vmatpush.bf16.msra.mxu0 %v582
    %881 = vmatmul.bf16.gmra.mxu0 %v131
    %v882 = vpop.f32.mrf.mxu0
    %v883 = vadd.f32 %v869, %v882
    %v884 = vpop.f32.mrf.mxu0
    %v885 = vadd.f32 %v871, %v884
    %886 = vdwg.mxu0
    %887 = vmatpush.bf16.msra.mxu0 %v612
    %888 = vmatpush.bf16.msra.mxu0 %v610
    %889 = vmatpush.bf16.msra.mxu0 %v608
    %890 = vmatpush.bf16.msra.mxu0 %v606
    %891 = vmatpush.bf16.msra.mxu0 %v604
    %892 = vmatpush.bf16.msra.mxu0 %v602
    %893 = vmatpush.bf16.msra.mxu0 %v600
    %894 = vmatpush.bf16.msra.mxu0 %v598
    %895 = vmatmul.bf16.gmra.mxu0 %v132
    %v896 = vpop.f32.mrf.mxu0
    %v897 = vadd.f32 %v883, %v896
    %v898 = vpop.f32.mrf.mxu0
    %v899 = vadd.f32 %v885, %v898
    %900 = vdwg.mxu0
    %901 = vmatpush.bf16.msra.mxu0 %v628
    %902 = vmatpush.bf16.msra.mxu0 %v626
    %903 = vmatpush.bf16.msra.mxu0 %v624
    %904 = vmatpush.bf16.msra.mxu0 %v622
    %905 = vmatpush.bf16.msra.mxu0 %v620
    %906 = vmatpush.bf16.msra.mxu0 %v618
    %907 = vmatpush.bf16.msra.mxu0 %v616
    %908 = vmatpush.bf16.msra.mxu0 %v614
    %909 = vmatmul.bf16.gmra.mxu0 %v133
    %v910 = vpop.f32.mrf.mxu0
    %v911 = vadd.f32 %v897, %v910
    %v912 = vpop.f32.mrf.mxu0
    %v913 = vadd.f32 %v899, %v912
    %914 = vdwg.mxu0
    %915 = vmatpush.bf16.msra.mxu0 0
    %916 = vmatpush.bf16.msra.mxu0 0
    %917 = vmatpush.bf16.msra.mxu0 0
    %918 = vmatpush.bf16.msra.mxu0 0
    %919 = vmatpush.bf16.msra.mxu0 0
    %920 = vmatpush.bf16.msra.mxu0 0
    %921 = vmatpush.bf16.msra.mxu0 0
    %922 = vmatpush.bf16.msra.mxu0 %v630
    %923 = vmatmul.bf16.gmra.mxu0 %v731
    %v924 = vpop.f32.mrf.mxu0
    %v925 = vadd.f32 %v911, %v924
    %v926 = vpop.f32.mrf.mxu0
    %v927 = vadd.f32 %v913, %v926
    %928 = vdwg.mxu0
    %v929 = vmax.f32 %v827, 0.0
    %v930 = vmax.f32 %v925, 0.0
    %v931 = vmax.f32 %v829, 0.0
    %v932 = vmax.f32 %v927, 0.0
    %v933 = vpack.c.bf16 %v931, %v929
    %v934 = vpack.c.bf16 %v932, %v930
    %v935 = vld [vmem:[#allocation9] sm:$0xf]
    %v936 = vld [vmem:[#allocation9 + $0x4] sm:$0xf]
    %v937 = vld [vmem:[#allocation9 + $0x8] sm:$0xf]
    %v938 = vld [vmem:[#allocation9 + $0xc] sm:$0xf]
    %v939 = vld [vmem:[#allocation9 + $0x10] sm:$0xf]
    %v940 = vld [vmem:[#allocation9 + $0x14] sm:$0xf]
    %v941 = vld [vmem:[#allocation9 + $0x18] sm:$0xf]
    %v942 = vld [vmem:[#allocation9 + $0x1c] sm:$0xf]
    %v943 = vld [vmem:[#allocation9 + $0x20] sm:$0xf]
    %v944 = vld [vmem:[#allocation9 + $0x24] sm:$0xf]
    %v945 = vld [vmem:[#allocation9 + $0x28] sm:$0xf]
    %v946 = vld [vmem:[#allocation9 + $0x2c] sm:$0xf]
    %v947 = vld [vmem:[#allocation9 + $0x30] sm:$0xf]
    %v948 = vld [vmem:[#allocation9 + $0x34] sm:$0xf]
    %v949 = vld [vmem:[#allocation9 + $0x38] sm:$0xf]
    %v950 = vld [vmem:[#allocation9 + $0x3c] sm:$0xf]
    %v951 = vld [vmem:[#allocation9 + $0x40] sm:$0xf]
    %v952 = vld [vmem:[#allocation9 + $0x44] sm:$0xf]
    %v953 = vld [vmem:[#allocation9 + $0x48] sm:$0xf]
    %v954 = vld [vmem:[#allocation9 + $0x4c] sm:$0xf]
    %v955 = vld [vmem:[#allocation9 + $0x50] sm:$0xf]
    %v956 = vld [vmem:[#allocation9 + $0x54] sm:$0xf]
    %v957 = vld [vmem:[#allocation9 + $0x58] sm:$0xf]
    %v958 = vld [vmem:[#allocation9 + $0x5c] sm:$0xf]
    %v959 = vld [vmem:[#allocation9 + $0x60] sm:$0xf]
    %v960 = vld [vmem:[#allocation9 + $0x64] sm:$0xf]
    %v961 = vld [vmem:[#allocation9 + $0x68] sm:$0xf]
    %v962 = vld [vmem:[#allocation9 + $0x6c] sm:$0xf]
    %v963 = vld [vmem:[#allocation9 + $0x70] sm:$0xf]
    %v964 = vld [vmem:[#allocation9 + $0x74] sm:$0xf]
    %v965 = vld [vmem:[#allocation9 + $0x78] sm:$0xf]
    %v966 = vld [vmem:[#allocation9 + $0x7c] sm:$0xf]
    %v967 = vld [vmem:[%s5] sm:$0x1]
    %v969 = vperm.slane %v967, 0
    %v1003 = vunpack.c.l.b16 %v935
    %v1004 = vunpack.c.l.b16 %v936
    %v1005 = vunpack.c.l.b16 %v937
    %v1006 = vunpack.c.l.b16 %v938
    %v1007 = vunpack.c.l.b16 %v939
    %v1008 = vunpack.c.l.b16 %v940
    %v1009 = vunpack.c.l.b16 %v941
    %v1010 = vunpack.c.l.b16 %v942
    %v1011 = vunpack.c.l.b16 %v943
    %v1012 = vunpack.c.l.b16 %v944
    %v1013 = vunpack.c.l.b16 %v945
    %v1014 = vunpack.c.l.b16 %v946
    %v1015 = vunpack.c.l.b16 %v947
    %v1016 = vunpack.c.l.b16 %v948
    %v1017 = vunpack.c.l.b16 %v949
    %v1018 = vunpack.c.l.b16 %v950
    %v1019 = vunpack.c.l.b16 %v951
    %v1020 = vunpack.c.l.b16 %v952
    %v1021 = vunpack.c.l.b16 %v953
    %v1022 = vunpack.c.l.b16 %v954
    %v1023 = vunpack.c.l.b16 %v955
    %v1024 = vunpack.c.l.b16 %v956
    %v1025 = vunpack.c.l.b16 %v957
    %v1026 = vunpack.c.l.b16 %v958
    %v1027 = vunpack.c.l.b16 %v959
    %v1028 = vunpack.c.l.b16 %v960
    %v1029 = vunpack.c.l.b16 %v961
    %v1030 = vunpack.c.l.b16 %v962
    %v1031 = vunpack.c.l.b16 %v963
    %v1032 = vunpack.c.l.b16 %v964
    %v1033 = vunpack.c.l.b16 %v965
    %v1034 = vunpack.c.l.b16 %v966
    %v1035 = vpack.c.b16 %v1004, %v1003
    %v1036 = vpack.c.b16 %v1006, %v1005
    %v1037 = vpack.c.b16 %v1008, %v1007
    %v1038 = vpack.c.b16 %v1010, %v1009
    %v1039 = vpack.c.b16 %v1012, %v1011
    %v1040 = vpack.c.b16 %v1014, %v1013
    %v1041 = vpack.c.b16 %v1016, %v1015
    %v1042 = vpack.c.b16 %v1018, %v1017
    %v1043 = vpack.c.b16 %v1020, %v1019
    %v1044 = vpack.c.b16 %v1022, %v1021
    %v1045 = vpack.c.b16 %v1024, %v1023
    %v1046 = vpack.c.b16 %v1026, %v1025
    %v1047 = vpack.c.b16 %v1028, %v1027
    %v1048 = vpack.c.b16 %v1030, %v1029
    %v1049 = vpack.c.b16 %v1032, %v1031
    %v1050 = vpack.c.b16 %v1034, %v1033
    %1067 = vmatpush.bf16.msra.mxu0 %v1042
    %1068 = vmatpush.bf16.msra.mxu0 %v1041
    %1069 = vmatpush.bf16.msra.mxu0 %v1040
    %1070 = vmatpush.bf16.msra.mxu0 %v1039
    %1071 = vmatpush.bf16.msra.mxu0 %v1038
    %1072 = vmatpush.bf16.msra.mxu0 %v1037
    %1073 = vmatpush.bf16.msra.mxu0 %v1036
    %1074 = vmatpush.bf16.msra.mxu0 %v1035
    %1075 = vmatmul.bf16.gmra.mxu0 %v933
    %v1076 = vpop.f32.mrf.mxu0
    %v1077 = vadd.f32 %v969, %v1076
    %v1078 = vpop.f32.mrf.mxu0
    %v1079 = vadd.f32 %v969, %v1078
    %1080 = vdwg.mxu0
    %1081 = vmatpush.bf16.msra.mxu0 %v1050
    %1082 = vmatpush.bf16.msra.mxu0 %v1049
    %1083 = vmatpush.bf16.msra.mxu0 %v1048
    %1084 = vmatpush.bf16.msra.mxu0 %v1047
    %1085 = vmatpush.bf16.msra.mxu0 %v1046
    %1086 = vmatpush.bf16.msra.mxu0 %v1045
    %1087 = vmatpush.bf16.msra.mxu0 %v1044
    %1088 = vmatpush.bf16.msra.mxu0 %v1043
    %1089 = vmatmul.bf16.gmra.mxu0 %v934
    %v1090 = vpop.f32.mrf.mxu0
    %v1091 = vadd.f32 %v1077, %v1090
    %v1092 = vpop.f32.mrf.mxu0
    %v1093 = vadd.f32 %v1079, %v1092
    %1094 = vdwg.mxu0
    %v1095 = vmax.f32 %v1091, 0.0
    %v1096 = vmax.f32 %v1093, 0.0
    %v1097 = vpack.c.bf16 %v1096, %v1095
    %v1098 = vld [vmem:[#allocation10] sm:$0xf]
    %v1099 = vld [vmem:[#allocation10 + $0x4] sm:$0xf]
    %v1100 = vld [vmem:[#allocation10 + $0x8] sm:$0xf]
    %v1101 = vld [vmem:[#allocation10 + $0xc] sm:$0xf]
    %v1102 = vld [vmem:[#allocation10 + $0x10] sm:$0xf]
    %v1103 = vld [vmem:[#allocation10 + $0x14] sm:$0xf]
    %v1104 = vld [vmem:[#allocation10 + $0x18] sm:$0xf]
    %v1105 = vld [vmem:[#allocation10 + $0x1c] sm:$0xf]
    %v1106 = vld [vmem:[#allocation10 + $0x20] sm:$0xf]
    %v1107 = vld [vmem:[#allocation10 + $0x24] sm:$0xf]
    %v1108 = vld [vmem:[#allocation10 + $0x28] sm:$0xf]
    %v1109 = vld [vmem:[#allocation10 + $0x2c] sm:$0xf]
    %v1110 = vld [vmem:[#allocation10 + $0x30] sm:$0xf]
    %v1111 = vld [vmem:[#allocation10 + $0x34] sm:$0xf]
    %v1112 = vld [vmem:[#allocation10 + $0x38] sm:$0xf]
    %v1113 = vld [vmem:[#allocation10 + $0x3c] sm:$0xf]
    %v1114 = vld [vmem:[%s7] sm:$0x1]
    %v1116 = vperm.slane %v1114, 0
    %v1134 = vunpack.c.l.b16 %v1098
    %v1135 = vunpack.c.l.b16 %v1099
    %v1136 = vunpack.c.l.b16 %v1100
    %v1137 = vunpack.c.l.b16 %v1101
    %v1138 = vunpack.c.l.b16 %v1102
    %v1139 = vunpack.c.l.b16 %v1103
    %v1140 = vunpack.c.l.b16 %v1104
    %v1141 = vunpack.c.l.b16 %v1105
    %v1142 = vunpack.c.l.b16 %v1106
    %v1143 = vunpack.c.l.b16 %v1107
    %v1144 = vunpack.c.l.b16 %v1108
    %v1145 = vunpack.c.l.b16 %v1109
    %v1146 = vunpack.c.l.b16 %v1110
    %v1147 = vunpack.c.l.b16 %v1111
    %v1148 = vunpack.c.l.b16 %v1112
    %v1149 = vunpack.c.l.b16 %v1113
    %v1150 = vpack.c.b16 %v1135, %v1134
    %v1151 = vpack.c.b16 %v1137, %v1136
    %v1152 = vpack.c.b16 %v1139, %v1138
    %v1153 = vpack.c.b16 %v1141, %v1140
    %v1154 = vpack.c.b16 %v1143, %v1142
    %v1155 = vpack.c.b16 %v1145, %v1144
    %v1156 = vpack.c.b16 %v1147, %v1146
    %v1157 = vpack.c.b16 %v1149, %v1148
    %1166 = vmatpush.bf16.msra.mxu0 %v1157
    %1167 = vmatpush.bf16.msra.mxu0 %v1156
    %1168 = vmatpush.bf16.msra.mxu0 %v1155
    %1169 = vmatpush.bf16.msra.mxu0 %v1154
    %1170 = vmatpush.bf16.msra.mxu0 %v1153
    %1171 = vmatpush.bf16.msra.mxu0 %v1152
    %1172 = vmatpush.bf16.msra.mxu0 %v1151
    %1173 = vmatpush.bf16.msra.mxu0 %v1150
    %1174 = vmatmul.bf16.gmra.mxu0 %v1097
    %v1175 = vpop.f32.mrf.mxu0
    %v1176 = vadd.f32 %v1116, %v1175
    %v1177 = vpop.f32.mrf.mxu0
    %v1178 = vadd.f32 %v1116, %v1177
    %1179 = vdwg.mxu0
    %v1180 = vmax.f32 %v1176, 0.0
    %v1181 = vmax.f32 %v1178, 0.0
    %v1182 = vpack.c.bf16 %v1181, %v1180
    %v1183 = vld [vmem:[#allocation12] sm:$0xf]
    %v1184 = vld [vmem:[#allocation12 + $0x4] sm:$0xf]
    %v1185 = vld [vmem:[#allocation12 + $0x8] sm:$0xf]
    %v1186 = vld [vmem:[#allocation12 + $0xc] sm:$0xf]
    %v1187 = vld [vmem:[#allocation12 + $0x10] sm:$0xf]
    %v1188 = vld [vmem:[#allocation12 + $0x14] sm:$0xf]
    %v1189 = vld [vmem:[#allocation12 + $0x18] sm:$0xf]
    %v1190 = vld [vmem:[#allocation12 + $0x1c] sm:$0xf]
    %v1191 = vld [vmem:[#allocation12 + $0x20] sm:$0xf]
    %v1192 = vld [vmem:[#allocation12 + $0x24] sm:$0xf]
    %v1193 = vld [vmem:[#allocation12 + $0x28] sm:$0xf]
    %v1194 = vld [vmem:[#allocation12 + $0x2c] sm:$0xf]
    %v1195 = vld [vmem:[#allocation12 + $0x30] sm:$0xf]
    %v1196 = vld [vmem:[#allocation12 + $0x34] sm:$0xf]
    %v1197 = vld [vmem:[#allocation12 + $0x38] sm:$0xf]
    %v1198 = vld [vmem:[#allocation12 + $0x3c] sm:$0xf]
    %v1199 = vld [vmem:[%s9] sm:$0x1]
    %v1201 = vperm.slane %v1199, 0
    %v1219 = vunpack.c.l.b16 %v1183
    %v1220 = vunpack.c.l.b16 %v1184
    %v1221 = vunpack.c.l.b16 %v1185
    %v1222 = vunpack.c.l.b16 %v1186
    %v1223 = vunpack.c.l.b16 %v1187
    %v1224 = vunpack.c.l.b16 %v1188
    %v1225 = vunpack.c.l.b16 %v1189
    %v1226 = vunpack.c.l.b16 %v1190
    %v1227 = vunpack.c.l.b16 %v1191
    %v1228 = vunpack.c.l.b16 %v1192
    %v1229 = vunpack.c.l.b16 %v1193
    %v1230 = vunpack.c.l.b16 %v1194
    %v1231 = vunpack.c.l.b16 %v1195
    %v1232 = vunpack.c.l.b16 %v1196
    %v1233 = vunpack.c.l.b16 %v1197
    %v1234 = vunpack.c.l.b16 %v1198
    %v1235 = vpack.c.b16 %v1220, %v1219
    %v1236 = vpack.c.b16 %v1222, %v1221
    %v1237 = vpack.c.b16 %v1224, %v1223
    %v1238 = vpack.c.b16 %v1226, %v1225
    %v1239 = vpack.c.b16 %v1228, %v1227
    %v1240 = vpack.c.b16 %v1230, %v1229
    %v1241 = vpack.c.b16 %v1232, %v1231
    %v1242 = vpack.c.b16 %v1234, %v1233
    %1251 = vmatpush.bf16.msra.mxu0 %v1242
    %1252 = vmatpush.bf16.msra.mxu0 %v1241
    %1253 = vmatpush.bf16.msra.mxu0 %v1240
    %1254 = vmatpush.bf16.msra.mxu0 %v1239
    %1255 = vmatpush.bf16.msra.mxu0 %v1238
    %1256 = vmatpush.bf16.msra.mxu0 %v1237
    %1257 = vmatpush.bf16.msra.mxu0 %v1236
    %1258 = vmatpush.bf16.msra.mxu0 %v1235
    %1259 = vmatmul.bf16.gmra.mxu0 %v1182
    %v1260 = vpop.f32.mrf.mxu0
    %v1261 = vadd.f32 %v1201, %v1260
    %v1262 = vpop.f32.mrf.mxu0
    %v1263 = vadd.f32 %v1201, %v1262
    %1264 = vdwg.mxu0
    %1265 = vmax.xlane.f32.xlu0 %v1261
    %v1266 = vpop.xlane.xlu0 %1265
    %1267 = vmax.xlane.f32.xlu0 %v1263
    %v1268 = vpop.xlane.xlu0 %1267
    %v1269 = vsub.f32 %v1261, %v1266
    %v1270 = vsub.f32 %v1263, %v1268
    %v1271 = vmul.f32 %v1269, 1.442695
    %v1272 = vpow.pop %v1271
    %v1273 = vmul.f32 %v1270, 1.442695
    %v1274 = vpow.pop %v1273
    %1275 = vadd.xlane.f32.xlu0 %v1272
    %v1276 = vpop.xlane.xlu0 %1275
    %1277 = vadd.xlane.f32.xlu0 %v1274
    %v1278 = vpop.xlane.xlu0 %1277
    %v1279 = vlog2.pop %v1276
    %v1280 = vmul.f32 %v1279, 0.6931472
    %v1281 = vlog2.pop %v1278
    %v1282 = vmul.f32 %v1281, 0.6931472
    %v1283 = vsub.f32 %v1269, %v1280
    %v1284 = vsub.f32 %v1270, %v1282
    %1285 = vst [vmem:[#allocation13] sm:$0xff] %v1283
    %1286 = vst [vmem:[#allocation13 + $0x8] sm:$0xff] %v1284
    // Predicated region
    $region58: #{tpu_custom_call.1} parent=1 // pred_check
      _
    $region59: #{tpu_custom_call.1} parent=1 // pred_check_branch
      %1288 = sbr.rel (0) target = $region61
    $region60: #{tpu_custom_call.1} parent=1 // pred_region
      %1290 = vsyncadd [#allocation6], 0
      %s1291 = sshll.u32 [#allocation13], 4
      %s1292 = int_to_ptr.vmem [resolvable:$true] %s1291
      %s1293 = sshll.u32 %s10, 4
      %s1294 = int_to_ptr.hbm [resolvable:$true] %s1293
      %1299 = dma.vmem_to_hbm [thread:$0]  %s1292, 256, %s1294, [#allocation6], 128, 128, 8
    $region61: #{tpu_custom_call.1} parent=1 // pred_fallthru
      _
    // Predicated region
    $region62: #{tpu_custom_call.1} parent=1 // pred_check
      _
    $region63: #{tpu_custom_call.1} parent=1 // pred_check_branch
      %1301 = sbr.rel (0) target = $region65
    $region64: #{tpu_custom_call.1} parent=1 // pred_region
      %1303 = dma.done [#allocation6], 256
    $region65: #{tpu_custom_call.1} parent=1 // pred_fallthru
      _
    %1304 = vsyncpa [#allocation5], 1
    %1305 = vsyncpa [#allocation8], 1
    %1306 = vsyncpa [#allocation11], 1
    %1307 = vsyncpa [#allocation6], 1

</llo_original>
